<compile_context>
chip_gen: v7x
topology: tpu7x:2x2x1
jax: 0.10.0
libtpu: 0.0.40
codegen_flags: <defaults>
</compile_context>

<pallas_src>
import jax
import jax.numpy as jnp
from jax.experimental import pallas as pl
from jax.experimental.pallas import tpu as pltpu


OUT_PAD = 128  # classifier output padded from 2 to 128 lanes (lane-dense store)


# ----------------------------- Pallas kernel ------------------------------ #
def hike_kernel(vqd_ref, kg_ref,
                wkf_qd_ref, wkf_fold_ref, bkf_ref,
                wlf_qd_ref, wlf_kg_ref, wlf_kf_ref, blf_ref,
                wc_ref, bc_ref,
                out_ref):
    f32 = jnp.float32
    bf16 = jnp.bfloat16
    # In-kernel cast (VPU, hidden under MXU) — inputs arrive as f32 tiles.
    vqd = vqd_ref[...].astype(bf16)   # [TB, H] query/doc CLS embedding
    kg = kg_ref[...].astype(bf16)     # [TB, H] KG CLS embedding

    # knowledge_level_fusion with the seq_len==1 attention path pre-folded:
    #   kf = vqd @ Wkf_qd + kg @ (Wv Wo Wkf_attn) + (bkf + (bv Wo + bo) Wkf_attn)
    kf = (jnp.dot(vqd, wkf_qd_ref[...], preferred_element_type=f32)
          + jnp.dot(kg, wkf_fold_ref[...], preferred_element_type=f32)
          + bkf_ref[...])

    # language_level_fusion: Linear(concat([vqd, kg, kf], -1))  (3H -> H)
    lf = (jnp.dot(vqd, wlf_qd_ref[...], preferred_element_type=f32)
          + jnp.dot(kg, wlf_kg_ref[...], preferred_element_type=f32)
          + jnp.dot(kf.astype(bf16), wlf_kf_ref[...],
                    preferred_element_type=f32)
          + blf_ref[...])

    # classifier: H -> 2, zero-padded to 128 output lanes (unmasked vst).
    logits = (jnp.dot(lf.astype(bf16), wc_ref[...], preferred_element_type=f32)
              + bc_ref[...])
    out_ref[...] = logits.astype(out_ref.dtype)


# ------------------------------- wrapper ----------------------------------- #
def hike_forward(vqd, e_s_kg, e_t_kg, params, *, tb=None):
    """Pallas wrapper. e_t_kg is accepted but unused (as in the source)."""
    del e_t_kg  # unused in the original forward
    B, H = vqd.shape

    if tb is None:
        # Per-generation default: 512 on v6e/v7x, 256 on v5e.
        try:
            kind = jax.devices()[0].device_kind.lower()
        except Exception:  # pragma: no cover
            kind = ""
        tb = 256 if "v5" in kind else 512
    # Clamp to batch and round to a multiple of 8 (sublane constraint).
    tb = max(8, min(tb, B))
    tb = (tb // 8) * 8
    grid = (pl.cdiv(B, tb),)

    act_spec = pl.BlockSpec((tb, H), lambda i: (i, 0))
    out_spec = pl.BlockSpec((tb, OUT_PAD), lambda i: (i, 0))

    def resident(arr):
        # Constant index_map + single buffering: weight/bias DMA'd once and
        # held VMEM-resident across all batch tiles (no 2x footprint).
        zeros = (0,) * arr.ndim
        return pl.BlockSpec(arr.shape, lambda i: zeros,
                            pipeline_mode=pl.Buffered(1))

    weight_args = (
        params["wkf_qd_t"], params["wkf_fold_t"], params["bkf"],
        params["wlf_qd_t"], params["wlf_kg_t"], params["wlf_kf_t"],
        params["blf"], params["wc_t"], params["bc"])
    args = (vqd, e_s_kg) + weight_args
    in_specs = [act_spec, act_spec] + [resident(w) for w in weight_args]

    weight_bytes = sum(int(w.size) * w.dtype.itemsize for w in weight_args)
    act_bytes = 2 * B * H * vqd.dtype.itemsize
    flops = 2 * B * H * (5 * H + OUT_PAD)
    bytes_accessed = weight_bytes + act_bytes + B * OUT_PAD * 2  # bf16 out

    # Explicit VMEM budget: single-buffered weights + double-buffered
    # activation/output tiles + 4 MiB headroom for internal scratch.
    vmem_limit = int(weight_bytes
                     + 2 * 2 * tb * H * vqd.dtype.itemsize   # 2 inputs, 2 bufs
                     + 2 * tb * OUT_PAD * 2                   # bf16 out, 2 bufs
                     + (4 << 20))

    padded = pl.pallas_call(
        hike_kernel,
        out_shape=jax.ShapeDtypeStruct((B, OUT_PAD), jnp.bfloat16),
        grid=grid,
        in_specs=in_specs,
        out_specs=out_spec,
        compiler_params=pltpu.CompilerParams(
            dimension_semantics=("parallel",),
            vmem_limit_bytes=vmem_limit),
        cost_estimate=pl.CostEstimate(
            flops=flops, transcendentals=0, bytes_accessed=bytes_accessed),
    )(*args)
    return padded[:, :2]


# --------------------------- parameter creation ---------------------------- #
def make_params(key, hidden):
    """Deterministic synthetic weights in PyTorch layout, then repacked.

    All folding / transposition is done in f32 and cast to bf16 exactly once.
    """
    H = hidden
    ks = jax.random.split(key, 10)
    s = 0.02
    pt = {
        # nn.MultiheadAttention
        "in_proj_w": s * jax.random.normal(ks[0], (3 * H, H), jnp.float32),
        "in_proj_b": s * jax.random.normal(ks[1], (3 * H,), jnp.float32),
        "out_proj_w": s * jax.random.normal(ks[2], (H, H), jnp.float32),
        "out_proj_b": s * jax.random.normal(ks[3], (H,), jnp.float32),
        # knowledge_level_fusion: Linear(2H -> H)
        "kf_w": s * jax.random.normal(ks[4], (H, 2 * H), jnp.float32),
        "kf_b": s * jax.random.normal(ks[5], (H,), jnp.float32),
        # language_level_fusion: Linear(3H -> H)
        "lf_w": s * jax.random.normal(ks[6], (H, 3 * H), jnp.float32),
        "lf_b": s * jax.random.normal(ks[7], (H,), jnp.float32),
        # classifier: Linear(H -> 2)
        "c_w": s * jax.random.normal(ks[8], (2, H), jnp.float32),
        "c_b": s * jax.random.normal(ks[9], (2,), jnp.float32),
    }
    f32, bf16 = jnp.float32, jnp.bfloat16
    hi = jax.lax.Precision.HIGHEST

    # Value-projection slice of the MHA in_proj (q/k projections cancel for
    # seq_len == 1 since softmax over a single key is identically 1).
    wv_t = pt["in_proj_w"][2 * H:].T          # [H, H]  (in, out)
    bv = pt["in_proj_b"][2 * H:]              # [H]
    wo_t = pt["out_proj_w"].T                 # [H, H]
    bo = pt["out_proj_b"]                     # [H]
    wkf_qd_t = pt["kf_w"][:, :H].T            # [H, H]
    wkf_attn_t = pt["kf_w"][:, H:].T          # [H, H]

    # Offline fold (f32, HIGHEST): attn path collapsed into knowledge fusion.
    wkf_fold = jnp.dot(jnp.dot(wv_t, wo_t, precision=hi), wkf_attn_t,
                       precision=hi)
    bkf_fold = pt["kf_b"] + jnp.dot(jnp.dot(bv, wo_t, precision=hi) + bo,
                                    wkf_attn_t, precision=hi)

    wc_pad = jnp.zeros((H, OUT_PAD), f32).at[:, :2].set(pt["c_w"].T)
    bc_pad = jnp.zeros((1, OUT_PAD), f32).at[0, :2].set(pt["c_b"])

    kernel_params = {
        "wkf_qd_t": wkf_qd_t.astype(bf16),
        "wkf_fold_t": wkf_fold.astype(bf16),
        "bkf": bkf_fold.reshape(1, H),
        "wlf_qd_t": pt["lf_w"][:, :H].T.astype(bf16),
        "wlf_kg_t": pt["lf_w"][:, H:2 * H].T.astype(bf16),
        "wlf_kf_t": pt["lf_w"][:, 2 * H:].T.astype(bf16),
        "blf": pt["lf_b"].reshape(1, H),
        "wc_t": wc_pad.astype(bf16),
        "bc": bc_pad,
    }
    return pt, kernel_params


# ------------------------------ JAX reference ------------------------------ #
def hike_ref(vqd, kg, pt):
    H = vqd.shape[1]
    hi = jax.lax.Precision.HIGHEST
    v = jnp.dot(kg, pt["in_proj_w"][2 * H:].T, precision=hi) + pt["in_proj_b"][2 * H:]
    attn = jnp.dot(v, pt["out_proj_w"].T, precision=hi) + pt["out_proj_b"]
    kf = jnp.dot(jnp.concatenate([vqd, attn], -1), pt["kf_w"].T, precision=hi) + pt["kf_b"]
    lf = jnp.dot(jnp.concatenate([vqd, kg, kf], -1), pt["lf_w"].T, precision=hi) + pt["lf_b"]
    return jnp.dot(lf, pt["c_w"].T, precision=hi) + pt["c_b"]


# ---------------------------------- main ----------------------------------- #
if __name__ == "__main__":
    B, H, TB = 32, 128, 16     # small hidden size (module default 768); grid=(2,)
    key = jax.random.PRNGKey(0)
    k_in, k_par = jax.random.split(key)
    k1, k2, k3 = jax.random.split(k_in, 3)

    # CLS embeddings that would come out of mBERT for the three inputs.
    v_qd = jax.random.normal(k1, (B, H), jnp.float32)
    e_s_kg = jax.random.normal(k2, (B, H), jnp.float32)
    e_t_kg = jax.random.normal(k3, (B, H), jnp.float32)  # unused, as in source

    pt_params, kernel_params = make_params(k_par, H)

    logits = hike_forward(v_qd, e_s_kg, e_t_kg, kernel_params, tb=TB)
    logits = jax.block_until_ready(logits)
    logits_f32 = logits.astype(jnp.float32)

    ref = hike_ref(v_qd, e_s_kg, pt_params)
    assert logits.shape == (B, 2)
    max_err = jnp.max(jnp.abs(logits_f32 - ref))
    assert jnp.allclose(logits_f32, ref, rtol=1e-2, atol=1e-2), (
        f"max abs err {max_err}")

    print("KERNEL_OK")
</pallas_src>

<mosaic_0001>
module attributes {stable_mosaic.version = 11 : i64} {
  func.func @hike_kernel(%arg0: i32, %arg1: memref<16x128xf32, #tpu.memory_space<vmem>>, %arg2: memref<16x128xf32, #tpu.memory_space<vmem>>, %arg3: memref<128x128xbf16, #tpu.memory_space<vmem>>, %arg4: memref<128x128xbf16, #tpu.memory_space<vmem>>, %arg5: memref<1x128xf32, #tpu.memory_space<vmem>>, %arg6: memref<128x128xbf16, #tpu.memory_space<vmem>>, %arg7: memref<128x128xbf16, #tpu.memory_space<vmem>>, %arg8: memref<128x128xbf16, #tpu.memory_space<vmem>>, %arg9: memref<1x128xf32, #tpu.memory_space<vmem>>, %arg10: memref<128x128xbf16, #tpu.memory_space<vmem>>, %arg11: memref<1x128xf32, #tpu.memory_space<vmem>>, %arg12: memref<16x128xbf16, #tpu.memory_space<vmem>>) attributes {dimension_semantics = [#tpu.dimension_semantics<parallel>], iteration_bounds = array<i64: 2>, scalar_prefetch = 0 : i64, scratch_operands = 0 : i64, tpu.core_type = #tpu.core_type<tc>, window_params = [{transform_indices = @transform_0, window_bounds = array<i64: 16, 128>}, {transform_indices = @transform_1, window_bounds = array<i64: 16, 128>}, {pipeline_mode = #tpu.pipeline_mode<synchronous>, transform_indices = @transform_2, window_bounds = array<i64: 128, 128>}, {pipeline_mode = #tpu.pipeline_mode<synchronous>, transform_indices = @transform_3, window_bounds = array<i64: 128, 128>}, {pipeline_mode = #tpu.pipeline_mode<synchronous>, transform_indices = @transform_4, window_bounds = array<i64: 1, 128>}, {pipeline_mode = #tpu.pipeline_mode<synchronous>, transform_indices = @transform_5, window_bounds = array<i64: 128, 128>}, {pipeline_mode = #tpu.pipeline_mode<synchronous>, transform_indices = @transform_6, window_bounds = array<i64: 128, 128>}, {pipeline_mode = #tpu.pipeline_mode<synchronous>, transform_indices = @transform_7, window_bounds = array<i64: 128, 128>}, {pipeline_mode = #tpu.pipeline_mode<synchronous>, transform_indices = @transform_8, window_bounds = array<i64: 1, 128>}, {pipeline_mode = #tpu.pipeline_mode<synchronous>, transform_indices = @transform_9, window_bounds = array<i64: 128, 128>}, {pipeline_mode = #tpu.pipeline_mode<synchronous>, transform_indices = @transform_10, window_bounds = array<i64: 1, 128>}, {transform_indices = @transform_11, window_bounds = array<i64: 16, 128>}]} {
    %c0 = arith.constant 0 : index
    %c0_0 = arith.constant 0 : index
    %0 = vector.load %arg1[%c0, %c0_0] : memref<16x128xf32, #tpu.memory_space<vmem>>, vector<16x128xf32>
    %1 = arith.truncf %0 : vector<16x128xf32> to vector<16x128xbf16>
    %c0_1 = arith.constant 0 : index
    %c0_2 = arith.constant 0 : index
    %2 = vector.load %arg2[%c0_1, %c0_2] : memref<16x128xf32, #tpu.memory_space<vmem>>, vector<16x128xf32>
    %3 = arith.truncf %2 : vector<16x128xf32> to vector<16x128xbf16>
    %c0_3 = arith.constant 0 : index
    %c0_4 = arith.constant 0 : index
    %4 = vector.load %arg3[%c0_3, %c0_4] : memref<128x128xbf16, #tpu.memory_space<vmem>>, vector<128x128xbf16>
    %cst = arith.constant dense<0.000000e+00> : vector<16x128xf32>
    %5 = tpu.matmul %1, %4, %cst {dimension_numbers = #tpu.dot_dimension_numbers<[1], [0], [0], [1], [0, 0, 1, 1], [], []>} : vector<16x128xbf16>, vector<128x128xbf16>, vector<16x128xf32> -> vector<16x128xf32>
    %c0_5 = arith.constant 0 : index
    %c0_6 = arith.constant 0 : index
    %6 = vector.load %arg4[%c0_5, %c0_6] : memref<128x128xbf16, #tpu.memory_space<vmem>>, vector<128x128xbf16>
    %cst_7 = arith.constant dense<0.000000e+00> : vector<16x128xf32>
    %7 = tpu.matmul %3, %6, %cst_7 {dimension_numbers = #tpu.dot_dimension_numbers<[1], [0], [0], [1], [0, 0, 1, 1], [], []>} : vector<16x128xbf16>, vector<128x128xbf16>, vector<16x128xf32> -> vector<16x128xf32>
    %8 = arith.addf %5, %7 : vector<16x128xf32>
    %c0_8 = arith.constant 0 : index
    %c0_9 = arith.constant 0 : index
    %9 = vector.load %arg5[%c0_8, %c0_9] : memref<1x128xf32, #tpu.memory_space<vmem>>, vector<1x128xf32>
    %10 = vector.broadcast %9 : vector<1x128xf32> to vector<16x128xf32>
    %11 = arith.addf %8, %10 : vector<16x128xf32>
    %c0_10 = arith.constant 0 : index
    %c0_11 = arith.constant 0 : index
    %12 = vector.load %arg6[%c0_10, %c0_11] : memref<128x128xbf16, #tpu.memory_space<vmem>>, vector<128x128xbf16>
    %cst_12 = arith.constant dense<0.000000e+00> : vector<16x128xf32>
    %13 = tpu.matmul %1, %12, %cst_12 {dimension_numbers = #tpu.dot_dimension_numbers<[1], [0], [0], [1], [0, 0, 1, 1], [], []>} : vector<16x128xbf16>, vector<128x128xbf16>, vector<16x128xf32> -> vector<16x128xf32>
    %c0_13 = arith.constant 0 : index
    %c0_14 = arith.constant 0 : index
    %14 = vector.load %arg7[%c0_13, %c0_14] : memref<128x128xbf16, #tpu.memory_space<vmem>>, vector<128x128xbf16>
    %cst_15 = arith.constant dense<0.000000e+00> : vector<16x128xf32>
    %15 = tpu.matmul %3, %14, %cst_15 {dimension_numbers = #tpu.dot_dimension_numbers<[1], [0], [0], [1], [0, 0, 1, 1], [], []>} : vector<16x128xbf16>, vector<128x128xbf16>, vector<16x128xf32> -> vector<16x128xf32>
    %16 = arith.addf %13, %15 : vector<16x128xf32>
    %17 = arith.truncf %11 : vector<16x128xf32> to vector<16x128xbf16>
    %c0_16 = arith.constant 0 : index
    %c0_17 = arith.constant 0 : index
    %18 = vector.load %arg8[%c0_16, %c0_17] : memref<128x128xbf16, #tpu.memory_space<vmem>>, vector<128x128xbf16>
    %cst_18 = arith.constant dense<0.000000e+00> : vector<16x128xf32>
    %19 = tpu.matmul %17, %18, %cst_18 {dimension_numbers = #tpu.dot_dimension_numbers<[1], [0], [0], [1], [0, 0, 1, 1], [], []>} : vector<16x128xbf16>, vector<128x128xbf16>, vector<16x128xf32> -> vector<16x128xf32>
    %20 = arith.addf %16, %19 : vector<16x128xf32>
    %c0_19 = arith.constant 0 : index
    %c0_20 = arith.constant 0 : index
    %21 = vector.load %arg9[%c0_19, %c0_20] : memref<1x128xf32, #tpu.memory_space<vmem>>, vector<1x128xf32>
    %22 = vector.broadcast %21 : vector<1x128xf32> to vector<16x128xf32>
    %23 = arith.addf %20, %22 : vector<16x128xf32>
    %24 = arith.truncf %23 : vector<16x128xf32> to vector<16x128xbf16>
    %c0_21 = arith.constant 0 : index
    %c0_22 = arith.constant 0 : index
    %25 = vector.load %arg10[%c0_21, %c0_22] : memref<128x128xbf16, #tpu.memory_space<vmem>>, vector<128x128xbf16>
    %cst_23 = arith.constant dense<0.000000e+00> : vector<16x128xf32>
    %26 = tpu.matmul %24, %25, %cst_23 {dimension_numbers = #tpu.dot_dimension_numbers<[1], [0], [0], [1], [0, 0, 1, 1], [], []>} : vector<16x128xbf16>, vector<128x128xbf16>, vector<16x128xf32> -> vector<16x128xf32>
    %c0_24 = arith.constant 0 : index
    %c0_25 = arith.constant 0 : index
    %27 = vector.load %arg11[%c0_24, %c0_25] : memref<1x128xf32, #tpu.memory_space<vmem>>, vector<1x128xf32>
    %28 = vector.broadcast %27 : vector<1x128xf32> to vector<16x128xf32>
    %29 = arith.addf %26, %28 : vector<16x128xf32>
    %30 = arith.truncf %29 : vector<16x128xf32> to vector<16x128xbf16>
    %c0_26 = arith.constant 0 : index
    %c0_27 = arith.constant 0 : index
    %31 = vector.load %arg12[%c0_26, %c0_27] : memref<16x128xbf16, #tpu.memory_space<vmem>>, vector<16x128xbf16>
    tpu.vector_store %arg12[%c0_26, %c0_27], %30 {strides = array<i32>} : memref<16x128xbf16, #tpu.memory_space<vmem>>, vector<16x128xbf16>,
    return
  }
  func.func @transform_0(%arg0: i32) -> (i32, i32) {
    %c0_i32 = arith.constant 0 : i32
    %c0_i32_0 = arith.constant 0 : i32
    return %arg0, %c0_i32 : i32, i32
  }
  func.func @transform_1(%arg0: i32) -> (i32, i32) {
    %c0_i32 = arith.constant 0 : i32
    %c0_i32_0 = arith.constant 0 : i32
    return %arg0, %c0_i32 : i32, i32
  }
  func.func @transform_2(%arg0: i32) -> (i32, i32) {
    %c0_i32 = arith.constant 0 : i32
    %c0_i32_0 = arith.constant 0 : i32
    %c0_i32_1 = arith.constant 0 : i32
    return %c0_i32, %c0_i32_0 : i32, i32
  }
  func.func @transform_3(%arg0: i32) -> (i32, i32) {
    %c0_i32 = arith.constant 0 : i32
    %c0_i32_0 = arith.constant 0 : i32
    %c0_i32_1 = arith.constant 0 : i32
    return %c0_i32, %c0_i32_0 : i32, i32
  }
  func.func @transform_4(%arg0: i32) -> (i32, i32) {
    %c0_i32 = arith.constant 0 : i32
    %c0_i32_0 = arith.constant 0 : i32
    %c0_i32_1 = arith.constant 0 : i32
    return %c0_i32, %c0_i32_0 : i32, i32
  }
  func.func @transform_5(%arg0: i32) -> (i32, i32) {
    %c0_i32 = arith.constant 0 : i32
    %c0_i32_0 = arith.constant 0 : i32
    %c0_i32_1 = arith.constant 0 : i32
    return %c0_i32, %c0_i32_0 : i32, i32
  }
  func.func @transform_6(%arg0: i32) -> (i32, i32) {
    %c0_i32 = arith.constant 0 : i32
    %c0_i32_0 = arith.constant 0 : i32
    %c0_i32_1 = arith.constant 0 : i32
    return %c0_i32, %c0_i32_0 : i32, i32
  }
  func.func @transform_7(%arg0: i32) -> (i32, i32) {
    %c0_i32 = arith.constant 0 : i32
    %c0_i32_0 = arith.constant 0 : i32
    %c0_i32_1 = arith.constant 0 : i32
    return %c0_i32, %c0_i32_0 : i32, i32
  }
  func.func @transform_8(%arg0: i32) -> (i32, i32) {
    %c0_i32 = arith.constant 0 : i32
    %c0_i32_0 = arith.constant 0 : i32
    %c0_i32_1 = arith.constant 0 : i32
    return %c0_i32, %c0_i32_0 : i32, i32
  }
  func.func @transform_9(%arg0: i32) -> (i32, i32) {
    %c0_i32 = arith.constant 0 : i32
    %c0_i32_0 = arith.constant 0 : i32
    %c0_i32_1 = arith.constant 0 : i32
    return %c0_i32, %c0_i32_0 : i32, i32
  }
  func.func @transform_10(%arg0: i32) -> (i32, i32) {
    %c0_i32 = arith.constant 0 : i32
    %c0_i32_0 = arith.constant 0 : i32
    %c0_i32_1 = arith.constant 0 : i32
    return %c0_i32, %c0_i32_0 : i32, i32
  }
  func.func @transform_11(%arg0: i32) -> (i32, i32) {
    %c0_i32 = arith.constant 0 : i32
    %c0_i32_0 = arith.constant 0 : i32
    return %arg0, %c0_i32 : i32, i32
  }
}

</mosaic_0001>

<llo_original>
// kernel: tpu_custom_call.1
$region0: #{tpu_custom_call.1}
  #allocation0 [shape = 'u32[]', space=smem, size = 0x4, offset = 0x4, fixed_abs, tag = 'smem constant byte address 0x4 - core index']
  #allocation1 [shape = 'u32[144,128]{1,0:T(1,128)}', space=vmem, size = 0x12000, scoped, tag = 'internal scratch']
  %s0 = inlined_call_operand.hbm [shape: f32[32,128], index: 0, kind: input, shape index: {}]
  %s1 = inlined_call_operand.hbm [shape: f32[32,128], index: 1, kind: input, shape index: {}]
  %s2 = inlined_call_operand.hbm [shape: bf16[128,128], index: 2, kind: input, shape index: {}]
  %s3 = inlined_call_operand.hbm [shape: bf16[128,128], index: 3, kind: input, shape index: {}]
  %s4 = inlined_call_operand.vmem [shape: f32[1,128], index: 4, kind: input, shape index: {}]
  %s5 = inlined_call_operand.hbm [shape: bf16[128,128], index: 5, kind: input, shape index: {}]
  %s6 = inlined_call_operand.hbm [shape: bf16[128,128], index: 6, kind: input, shape index: {}]
  %s7 = inlined_call_operand.hbm [shape: bf16[128,128], index: 7, kind: input, shape index: {}]
  %s8 = inlined_call_operand.vmem [shape: f32[1,128], index: 8, kind: input, shape index: {}]
  %s9 = inlined_call_operand.hbm [shape: bf16[128,128], index: 9, kind: input, shape index: {}]
  %s10 = inlined_call_operand.vmem [shape: f32[1,128], index: 10, kind: input, shape index: {}]
  %s11 = inlined_call_operand.hbm [shape: bf16[32,128], index: 11, kind: output, shape index: {}]
  %s12 = sld [smem:[#allocation0]]
  $region109: #{tpu_custom_call.1} parent=0
    _
  %s14 = ssub.s32 1, %s12
  %s15 = scalar_select 0, %s14, %s12
  $region1: #{tpu_custom_call.1} parent=0
    #allocation2 [shape = 'u8[16384]{0}', space=vmem, size = 0x4000, scoped, tag = 'input window, operand 0']
    #allocation3 [shape = 's32[2]{0}', space=sflag, size = 0x8, scoped, tag = 'scoped memory for tpu_custom_call.1']
    #allocation4 [shape = 's32[2]{0}', space=sflag, size = 0x8, scoped, tag = 'scoped memory for tpu_custom_call.1']
    #allocation5 [shape = 'u8[16384]{0}', space=vmem, size = 0x4000, scoped, tag = 'input window, operand 1']
    #allocation6 [shape = 's32[2]{0}', space=sflag, size = 0x8, scoped, tag = 'scoped memory for tpu_custom_call.1']
    #allocation7 [shape = 'u8[32768]{0}', space=vmem, size = 0x8000, scoped, tag = 'input window, operand 2, single buffered']
    #allocation8 [shape = 'u8[32768]{0}', space=vmem, size = 0x8000, scoped, tag = 'input window, operand 3, single buffered']
    #allocation9 [shape = 's32[1]{0}', space=sflag, size = 0x4, scoped, tag = 'scoped memory for tpu_custom_call.1']
    #allocation10 [shape = 'u8[32768]{0}', space=vmem, size = 0x8000, scoped, tag = 'input window, operand 5, single buffered']
    #allocation11 [shape = 'u8[32768]{0}', space=vmem, size = 0x8000, scoped, tag = 'input window, operand 6, single buffered']
    #allocation12 [shape = 's32[1]{0}', space=sflag, size = 0x4, scoped, tag = 'scoped memory for tpu_custom_call.1']
    #allocation13 [shape = 'u8[32768]{0}', space=vmem, size = 0x8000, scoped, tag = 'input window, operand 7, single buffered']
    #allocation14 [shape = 'u8[32768]{0}', space=vmem, size = 0x8000, scoped, tag = 'input window, operand 9, single buffered']
    #allocation15 [shape = 's32[1]{0}', space=sflag, size = 0x4, scoped, tag = 'scoped memory for tpu_custom_call.1']
    #allocation16 [shape = 'u8[8192]{0}', space=vmem, size = 0x2000, scoped, tag = 'output window, operand 0']
    %16 = vsyncpa [#allocation3], 0
    %s17 = scalar_lea.sflag [#allocation3], 1
    %18 = vsyncpa %s17, 0
    %19 = vsyncpa [#allocation6], 0
    %s20 = scalar_lea.sflag [#allocation6], 1
    %21 = vsyncpa %s20, 0
    %22 = vsyncpa [#allocation9], 0
    %23 = vsyncpa [#allocation12], 0
    %24 = vsyncpa [#allocation15], 0
    %25 = vsyncpa [#allocation4], 0
    %s26 = scalar_lea.sflag [#allocation4], 1
    %27 = vsyncpa %s26, 0
    loop: start=0, step=1, limit=4
    $region2: #{tpu_custom_call.1} parent=1 // loop_pre_header
      _
    $region3: #{tpu_custom_call.1} parent=1 // loop_header
      %s29 = sphi 0, %s33
      %p30 = scmp.ge.s32.totalorder %s29, 4
      %s39 = sphi 0, %s41
      %s42 = sphi 0, %s39
      %s43 = sphi 0, %s42
      %s59 = sphi 0, %s43
      %s65 = sphi 0, %s67
      %s68 = sphi 0, %s65
      %s69 = sphi 0, %s68
      %s85 = sphi 0, %s69
      %s89 = sphi 0, %s89
      %s91 = sphi 0, %s89
      %s92 = sphi 0, %s91
      %s106 = sphi 0, %s92
      %s110 = sphi 0, %s110
      %s112 = sphi 0, %s110
      %s113 = sphi 0, %s112
      %s127 = sphi 0, %s113
      %s131 = sphi 0, %s131
      %s133 = sphi 0, %s131
      %s134 = sphi 0, %s133
      %s148 = sphi 0, %s134
      %s152 = sphi 0, %s152
      %s154 = sphi 0, %s152
      %s155 = sphi 0, %s154
      %s169 = sphi 0, %s155
      %s173 = sphi 0, %s173
      %s175 = sphi 0, %s173
      %s176 = sphi 0, %s175
      %s190 = sphi 0, %s176
      %s194 = sphi 0, %s194
      %s196 = sphi 0, %s194
      %s197 = sphi 0, %s196
      %s211 = sphi 0, %s197
      %s215 = sphi 0, %s215
      %s217 = sphi 0, %s215
      %s218 = sphi 0, %s217
      %s232 = sphi 0, %s218
      %s236 = sphi 0, %s236
      %s238 = sphi 0, %s236
      %s239 = sphi 0, %s238
      %s253 = sphi 0, %s239
      %s257 = sphi 0, %s257
      %s259 = sphi 0, %s257
      %s260 = sphi 0, %s259
      %s274 = sphi 0, %s260
      %s280 = sphi 0, %s282
      %s283 = sphi 0, %s280
      %s284 = sphi 0, %s283
      %s300 = sphi 0, %s284
    $region4: #{tpu_custom_call.1} parent=1 // loop_header_branch
      %32 = sbr.rel (%p30) target = $region8
    $region5: #{tpu_custom_call.1} parent=1 // loop_body
      %s34 = ssub.s32 %s29, 1
      %s35 = ssub.s32 %s29, 2
      %s36 = sadd.s32 %s29, 1
      %s37 = ssub.s32 %s29, %s36
      %p38 = scmp.eq.s32.totalorder %s37, 0
      %s40 = sadd.s32 %s39, 1
      %s41 = scalar_select %p38, %s39, %s40
      %p44 = pneg %p38
      %p45 = scmp.eq.s32.totalorder %s29, 1
      %p46 = por %p44, %p45
      %p47 = scmp.ne.s32.totalorder %s39, %s42
      %p48 = scmp.eq.s32.totalorder %s29, 0
      %p49 = por %p47, %p48
      %p50 = scmp.ne.s32.totalorder %s39, %s42
      %p51 = scmp.eq.s32.totalorder %s34, 1
      %p52 = por %p50, %p51
      %p53 = scmp.ne.s32.totalorder %s42, %s43
      %p54 = scmp.eq.s32.totalorder %s34, 0
      %p55 = por %p53, %p54
      %p56 = scmp.ne.s32.totalorder %s42, %s43
      %p57 = scmp.eq.s32.totalorder %s35, 1
      %p58 = por %p56, %p57
      %p60 = scmp.ne.s32.totalorder %s43, %s59
      %p61 = scmp.eq.s32.totalorder %s35, 0
      %p62 = por %p60, %p61
      %s63 = ssub.s32 %s29, %s36
      %p64 = scmp.eq.s32.totalorder %s63, 0
      %s66 = sadd.s32 %s65, 1
      %s67 = scalar_select %p64, %s65, %s66
      %p70 = pneg %p64
      %p71 = scmp.eq.s32.totalorder %s29, 1
      %p72 = por %p70, %p71
      %p73 = scmp.ne.s32.totalorder %s65, %s68
      %p74 = scmp.eq.s32.totalorder %s29, 0
      %p75 = por %p73, %p74
      %p76 = scmp.ne.s32.totalorder %s65, %s68
      %p77 = scmp.eq.s32.totalorder %s34, 1
      %p78 = por %p76, %p77
      %p79 = scmp.ne.s32.totalorder %s68, %s69
      %p80 = scmp.eq.s32.totalorder %s34, 0
      %p81 = por %p79, %p80
      %p82 = scmp.ne.s32.totalorder %s68, %s69
      %p83 = scmp.eq.s32.totalorder %s35, 1
      %p84 = por %p82, %p83
      %p86 = scmp.ne.s32.totalorder %s69, %s85
      %p87 = scmp.eq.s32.totalorder %s35, 0
      %p88 = por %p86, %p87
      %s90 = sadd.s32 %s89, 1
      %p93 = scmp.eq.s32.totalorder %s29, 1
      %p94 = scmp.ne.s32.totalorder %s89, %s91
      %p95 = scmp.eq.s32.totalorder %s29, 0
      %p96 = por %p94, %p95
      %p97 = scmp.ne.s32.totalorder %s89, %s91
      %p98 = scmp.eq.s32.totalorder %s34, 1
      %p99 = por %p97, %p98
      %p100 = scmp.ne.s32.totalorder %s91, %s92
      %p101 = scmp.eq.s32.totalorder %s34, 0
      %p102 = por %p100, %p101
      %p103 = scmp.ne.s32.totalorder %s91, %s92
      %p104 = scmp.eq.s32.totalorder %s35, 1
      %p105 = por %p103, %p104
      %p107 = scmp.ne.s32.totalorder %s92, %s106
      %p108 = scmp.eq.s32.totalorder %s35, 0
      %p109 = por %p107, %p108
      %s111 = sadd.s32 %s110, 1
      %p114 = scmp.eq.s32.totalorder %s29, 1
      %p115 = scmp.ne.s32.totalorder %s110, %s112
      %p116 = scmp.eq.s32.totalorder %s29, 0
      %p117 = por %p115, %p116
      %p118 = scmp.ne.s32.totalorder %s110, %s112
      %p119 = scmp.eq.s32.totalorder %s34, 1
      %p120 = por %p118, %p119
      %p121 = scmp.ne.s32.totalorder %s112, %s113
      %p122 = scmp.eq.s32.totalorder %s34, 0
      %p123 = por %p121, %p122
      %p124 = scmp.ne.s32.totalorder %s112, %s113
      %p125 = scmp.eq.s32.totalorder %s35, 1
      %p126 = por %p124, %p125
      %p128 = scmp.ne.s32.totalorder %s113, %s127
      %p129 = scmp.eq.s32.totalorder %s35, 0
      %p130 = por %p128, %p129
      %s132 = sadd.s32 %s131, 1
      %p135 = scmp.eq.s32.totalorder %s29, 1
      %p136 = scmp.ne.s32.totalorder %s131, %s133
      %p137 = scmp.eq.s32.totalorder %s29, 0
      %p138 = por %p136, %p137
      %p139 = scmp.ne.s32.totalorder %s131, %s133
      %p140 = scmp.eq.s32.totalorder %s34, 1
      %p141 = por %p139, %p140
      %p142 = scmp.ne.s32.totalorder %s133, %s134
      %p143 = scmp.eq.s32.totalorder %s34, 0
      %p144 = por %p142, %p143
      %p145 = scmp.ne.s32.totalorder %s133, %s134
      %p146 = scmp.eq.s32.totalorder %s35, 1
      %p147 = por %p145, %p146
      %p149 = scmp.ne.s32.totalorder %s134, %s148
      %p150 = scmp.eq.s32.totalorder %s35, 0
      %p151 = por %p149, %p150
      %s153 = sadd.s32 %s152, 1
      %p156 = scmp.eq.s32.totalorder %s29, 1
      %p157 = scmp.ne.s32.totalorder %s152, %s154
      %p158 = scmp.eq.s32.totalorder %s29, 0
      %p159 = por %p157, %p158
      %p160 = scmp.ne.s32.totalorder %s152, %s154
      %p161 = scmp.eq.s32.totalorder %s34, 1
      %p162 = por %p160, %p161
      %p163 = scmp.ne.s32.totalorder %s154, %s155
      %p164 = scmp.eq.s32.totalorder %s34, 0
      %p165 = por %p163, %p164
      %p166 = scmp.ne.s32.totalorder %s154, %s155
      %p167 = scmp.eq.s32.totalorder %s35, 1
      %p168 = por %p166, %p167
      %p170 = scmp.ne.s32.totalorder %s155, %s169
      %p171 = scmp.eq.s32.totalorder %s35, 0
      %p172 = por %p170, %p171
      %s174 = sadd.s32 %s173, 1
      %p177 = scmp.eq.s32.totalorder %s29, 1
      %p178 = scmp.ne.s32.totalorder %s173, %s175
      %p179 = scmp.eq.s32.totalorder %s29, 0
      %p180 = por %p178, %p179
      %p181 = scmp.ne.s32.totalorder %s173, %s175
      %p182 = scmp.eq.s32.totalorder %s34, 1
      %p183 = por %p181, %p182
      %p184 = scmp.ne.s32.totalorder %s175, %s176
      %p185 = scmp.eq.s32.totalorder %s34, 0
      %p186 = por %p184, %p185
      %p187 = scmp.ne.s32.totalorder %s175, %s176
      %p188 = scmp.eq.s32.totalorder %s35, 1
      %p189 = por %p187, %p188
      %p191 = scmp.ne.s32.totalorder %s176, %s190
      %p192 = scmp.eq.s32.totalorder %s35, 0
      %p193 = por %p191, %p192
      %s195 = sadd.s32 %s194, 1
      %p198 = scmp.eq.s32.totalorder %s29, 1
      %p199 = scmp.ne.s32.totalorder %s194, %s196
      %p200 = scmp.eq.s32.totalorder %s29, 0
      %p201 = por %p199, %p200
      %p202 = scmp.ne.s32.totalorder %s194, %s196
      %p203 = scmp.eq.s32.totalorder %s34, 1
      %p204 = por %p202, %p203
      %p205 = scmp.ne.s32.totalorder %s196, %s197
      %p206 = scmp.eq.s32.totalorder %s34, 0
      %p207 = por %p205, %p206
      %p208 = scmp.ne.s32.totalorder %s196, %s197
      %p209 = scmp.eq.s32.totalorder %s35, 1
      %p210 = por %p208, %p209
      %p212 = scmp.ne.s32.totalorder %s197, %s211
      %p213 = scmp.eq.s32.totalorder %s35, 0
      %p214 = por %p212, %p213
      %s216 = sadd.s32 %s215, 1
      %p219 = scmp.eq.s32.totalorder %s29, 1
      %p220 = scmp.ne.s32.totalorder %s215, %s217
      %p221 = scmp.eq.s32.totalorder %s29, 0
      %p222 = por %p220, %p221
      %p223 = scmp.ne.s32.totalorder %s215, %s217
      %p224 = scmp.eq.s32.totalorder %s34, 1
      %p225 = por %p223, %p224
      %p226 = scmp.ne.s32.totalorder %s217, %s218
      %p227 = scmp.eq.s32.totalorder %s34, 0
      %p228 = por %p226, %p227
      %p229 = scmp.ne.s32.totalorder %s217, %s218
      %p230 = scmp.eq.s32.totalorder %s35, 1
      %p231 = por %p229, %p230
      %p233 = scmp.ne.s32.totalorder %s218, %s232
      %p234 = scmp.eq.s32.totalorder %s35, 0
      %p235 = por %p233, %p234
      %s237 = sadd.s32 %s236, 1
      %p240 = scmp.eq.s32.totalorder %s29, 1
      %p241 = scmp.ne.s32.totalorder %s236, %s238
      %p242 = scmp.eq.s32.totalorder %s29, 0
      %p243 = por %p241, %p242
      %p244 = scmp.ne.s32.totalorder %s236, %s238
      %p245 = scmp.eq.s32.totalorder %s34, 1
      %p246 = por %p244, %p245
      %p247 = scmp.ne.s32.totalorder %s238, %s239
      %p248 = scmp.eq.s32.totalorder %s34, 0
      %p249 = por %p247, %p248
      %p250 = scmp.ne.s32.totalorder %s238, %s239
      %p251 = scmp.eq.s32.totalorder %s35, 1
      %p252 = por %p250, %p251
      %p254 = scmp.ne.s32.totalorder %s239, %s253
      %p255 = scmp.eq.s32.totalorder %s35, 0
      %p256 = por %p254, %p255
      %s258 = sadd.s32 %s257, 1
      %p261 = scmp.eq.s32.totalorder %s29, 1
      %p262 = scmp.ne.s32.totalorder %s257, %s259
      %p263 = scmp.eq.s32.totalorder %s29, 0
      %p264 = por %p262, %p263
      %p265 = scmp.ne.s32.totalorder %s257, %s259
      %p266 = scmp.eq.s32.totalorder %s34, 1
      %p267 = por %p265, %p266
      %p268 = scmp.ne.s32.totalorder %s259, %s260
      %p269 = scmp.eq.s32.totalorder %s34, 0
      %p270 = por %p268, %p269
      %p271 = scmp.ne.s32.totalorder %s259, %s260
      %p272 = scmp.eq.s32.totalorder %s35, 1
      %p273 = por %p271, %p272
      %p275 = scmp.ne.s32.totalorder %s260, %s274
      %p276 = scmp.eq.s32.totalorder %s35, 0
      %p277 = por %p275, %p276
      %s278 = ssub.s32 %s29, %s36
      %p279 = scmp.eq.s32.totalorder %s278, 0
      %s281 = sadd.s32 %s280, 1
      %s282 = scalar_select %p279, %s280, %s281
      %p285 = pneg %p279
      %p286 = scmp.eq.s32.totalorder %s29, 1
      %p287 = por %p285, %p286
      %p288 = scmp.ne.s32.totalorder %s280, %s283
      %p289 = scmp.eq.s32.totalorder %s29, 0
      %p290 = por %p288, %p289
      %p291 = scmp.ne.s32.totalorder %s280, %s283
      %p292 = scmp.eq.s32.totalorder %s34, 1
      %p293 = por %p291, %p292
      %p294 = scmp.ne.s32.totalorder %s283, %s284
      %p295 = scmp.eq.s32.totalorder %s34, 0
      %p296 = por %p294, %p295
      %p297 = scmp.ne.s32.totalorder %s283, %s284
      %p298 = scmp.eq.s32.totalorder %s35, 1
      %p299 = por %p297, %p298
      %p301 = scmp.ne.s32.totalorder %s284, %s300
      %p302 = scmp.eq.s32.totalorder %s35, 0
      %p303 = por %p301, %p302
      %p304 = scmp.le.s32.totalorder 1, %s29
      %p305 = scmp.lt.s32.totalorder %s29, 3
      %p306 = pnand %p304, %p305
      %p307 = pneg %p306
      // Predicated region
      $region9: #{tpu_custom_call.1} parent=5 // pred_check
        _
      $region10: #{tpu_custom_call.1} parent=5 // pred_check_branch
        %309 = sbr.rel (%p306) target = $region12
      $region11: #{tpu_custom_call.1} parent=5 // pred_region
        %s310 = ssub.s32 %s29, 1
        // Predicated region
        $region13: #{tpu_custom_call.1} parent=11 // pred_check
          %p311 = pneg %p102
        $region14: #{tpu_custom_call.1} parent=11 // pred_check_branch
          %313 = sbr.rel (%p311) target = $region16
        $region15: #{tpu_custom_call.1} parent=11 // pred_region
          %s315 = ssub.s32 1024, 1024
          %316 = vsyncadd [#allocation6], %s315
          %s317 = sshll.u32 [#allocation7], 4
          %s318 = int_to_ptr.vmem [resolvable:$true] %s317
          %323 = dma.hbm_to_vmem [thread:$0]  %s2, 1024, %s318, [#allocation6], 64, 64, 4
        $region16: #{tpu_custom_call.1} parent=11 // pred_fallthru
          _
        // Predicated region
        $region17: #{tpu_custom_call.1} parent=11 // pred_check
          %p324 = pneg %p123
        $region18: #{tpu_custom_call.1} parent=11 // pred_check_branch
          %326 = sbr.rel (%p324) target = $region20
        $region19: #{tpu_custom_call.1} parent=11 // pred_region
          %s328 = ssub.s32 1024, 1024
          %329 = vsyncadd [#allocation9], %s328
          %s330 = sshll.u32 [#allocation8], 4
          %s331 = int_to_ptr.vmem [resolvable:$true] %s330
          %336 = dma.hbm_to_vmem [thread:$0]  %s3, 1024, %s331, [#allocation9], 64, 64, 4
        $region20: #{tpu_custom_call.1} parent=11 // pred_fallthru
          _
        // Predicated region
        $region21: #{tpu_custom_call.1} parent=11 // pred_check
          %p337 = pneg %p144
        $region22: #{tpu_custom_call.1} parent=11 // pred_check_branch
          %339 = sbr.rel (%p337) target = $region24
        $region23: #{tpu_custom_call.1} parent=11 // pred_region
          _
        $region24: #{tpu_custom_call.1} parent=11 // pred_fallthru
          _
        // Predicated region
        $region25: #{tpu_custom_call.1} parent=11 // pred_check
          %p340 = pneg %p165
        $region26: #{tpu_custom_call.1} parent=11 // pred_check_branch
          %342 = sbr.rel (%p340) target = $region28
        $region27: #{tpu_custom_call.1} parent=11 // pred_region
          %s344 = ssub.s32 1024, 1024
          %345 = vsyncadd [#allocation9], %s344
          %s346 = sshll.u32 [#allocation10], 4
          %s347 = int_to_ptr.vmem [resolvable:$true] %s346
          %352 = dma.hbm_to_vmem [thread:$0]  %s5, 1024, %s347, [#allocation9], 64, 64, 4
        $region28: #{tpu_custom_call.1} parent=11 // pred_fallthru
          _
        // Predicated region
        $region29: #{tpu_custom_call.1} parent=11 // pred_check
          %p353 = pneg %p186
        $region30: #{tpu_custom_call.1} parent=11 // pred_check_branch
          %355 = sbr.rel (%p353) target = $region32
        $region31: #{tpu_custom_call.1} parent=11 // pred_region
          %s357 = ssub.s32 1024, 1024
          %358 = vsyncadd [#allocation12], %s357
          %s359 = sshll.u32 [#allocation11], 4
          %s360 = int_to_ptr.vmem [resolvable:$true] %s359
          %365 = dma.hbm_to_vmem [thread:$0]  %s6, 1024, %s360, [#allocation12], 64, 64, 4
        $region32: #{tpu_custom_call.1} parent=11 // pred_fallthru
          _
        // Predicated region
        $region33: #{tpu_custom_call.1} parent=11 // pred_check
          %p366 = pneg %p207
        $region34: #{tpu_custom_call.1} parent=11 // pred_check_branch
          %368 = sbr.rel (%p366) target = $region36
        $region35: #{tpu_custom_call.1} parent=11 // pred_region
          %s370 = ssub.s32 1024, 1024
          %371 = vsyncadd [#allocation12], %s370
          %s372 = sshll.u32 [#allocation13], 4
          %s373 = int_to_ptr.vmem [resolvable:$true] %s372
          %378 = dma.hbm_to_vmem [thread:$0]  %s7, 1024, %s373, [#allocation12], 64, 64, 4
        $region36: #{tpu_custom_call.1} parent=11 // pred_fallthru
          _
        // Predicated region
        $region37: #{tpu_custom_call.1} parent=11 // pred_check
          %p379 = pneg %p228
        $region38: #{tpu_custom_call.1} parent=11 // pred_check_branch
          %381 = sbr.rel (%p379) target = $region40
        $region39: #{tpu_custom_call.1} parent=11 // pred_region
          _
        $region40: #{tpu_custom_call.1} parent=11 // pred_fallthru
          _
        // Predicated region
        $region41: #{tpu_custom_call.1} parent=11 // pred_check
          %p382 = pneg %p249
        $region42: #{tpu_custom_call.1} parent=11 // pred_check_branch
          %384 = sbr.rel (%p382) target = $region44
        $region43: #{tpu_custom_call.1} parent=11 // pred_region
          %s386 = ssub.s32 1024, 1024
          %387 = vsyncadd [#allocation15], %s386
          %s388 = sshll.u32 [#allocation14], 4
          %s389 = int_to_ptr.vmem [resolvable:$true] %s388
          %394 = dma.hbm_to_vmem [thread:$0]  %s9, 1024, %s389, [#allocation15], 64, 64, 4
        $region44: #{tpu_custom_call.1} parent=11 // pred_fallthru
          _
        // Predicated region
        $region45: #{tpu_custom_call.1} parent=11 // pred_check
          %p395 = pneg %p270
        $region46: #{tpu_custom_call.1} parent=11 // pred_check_branch
          %397 = sbr.rel (%p395) target = $region48
        $region47: #{tpu_custom_call.1} parent=11 // pred_region
          _
        $region48: #{tpu_custom_call.1} parent=11 // pred_fallthru
          _
      $region12: #{tpu_custom_call.1} parent=5 // pred_fallthru
        _
      %p398 = scmp.lt.s32.totalorder %s29, 2
      // Predicated region
      $region49: #{tpu_custom_call.1} parent=5 // pred_check
        %p399 = pneg %p398
      $region50: #{tpu_custom_call.1} parent=5 // pred_check_branch
        %401 = sbr.rel (%p399) target = $region52
      $region51: #{tpu_custom_call.1} parent=5 // pred_region
        // Predicated region
        $region53: #{tpu_custom_call.1} parent=51 // pred_check
          %p402 = pneg %p49
        $region54: #{tpu_custom_call.1} parent=51 // pred_check_branch
          %404 = sbr.rel (%p402) target = $region56
        $region55: #{tpu_custom_call.1} parent=51 // pred_region
          %s405 = sand.u32 %s39, 1
          %s406 = scalar_lea.sflag [#allocation3], %s405
          %s407 = sand.u32 %s39, 1
          %s408 = smul.addr %s407, 16
          %s409 = scalar_lea.vmem [#allocation2], %s408
          %s410 = smul.u32 2, %s29
          %s412 = ssub.s32 256, 256
          %413 = vsyncadd %s406, %s412
          %s414 = smul.addr %s410, 128
          %s415 = scalar_lea.hbm %s0, %s414
          %s416 = sshll.u32 %s409, 4
          %s417 = int_to_ptr.vmem [resolvable:$true] %s416
          %422 = dma.hbm_to_vmem [thread:$0]  %s415, 256, %s417, %s406, 128, 128, 8
        $region56: #{tpu_custom_call.1} parent=51 // pred_fallthru
          _
        // Predicated region
        $region57: #{tpu_custom_call.1} parent=51 // pred_check
          %p423 = pneg %p75
        $region58: #{tpu_custom_call.1} parent=51 // pred_check_branch
          %425 = sbr.rel (%p423) target = $region60
        $region59: #{tpu_custom_call.1} parent=51 // pred_region
          %s426 = sand.u32 %s29, 1
          %s427 = scalar_lea.sflag [#allocation6], %s426
          %s428 = sand.u32 %s65, 1
          %s429 = smul.addr %s428, 16
          %s430 = scalar_lea.vmem [#allocation5], %s429
          %s431 = smul.u32 2, %s29
          %s433 = ssub.s32 256, 256
          %434 = vsyncadd %s427, %s433
          %s435 = smul.addr %s431, 128
          %s436 = scalar_lea.hbm %s1, %s435
          %s437 = sshll.u32 %s430, 4
          %s438 = int_to_ptr.vmem [resolvable:$true] %s437
          %443 = dma.hbm_to_vmem [thread:$0]  %s436, 256, %s438, %s427, 128, 128, 8
        $region60: #{tpu_custom_call.1} parent=51 // pred_fallthru
          _
      $region52: #{tpu_custom_call.1} parent=5 // pred_fallthru
        _
      %p444 = scmp.le.s32.totalorder 1, %s29
      %p445 = scmp.lt.s32.totalorder %s29, 3
      %p446 = pnand %p444, %p445
      %p447 = pneg %p446
      // Predicated region
      $region61: #{tpu_custom_call.1} parent=5 // pred_check
        _
      $region62: #{tpu_custom_call.1} parent=5 // pred_check_branch
        %449 = sbr.rel (%p446) target = $region64
      $region63: #{tpu_custom_call.1} parent=5 // pred_region
        %s450 = ssub.s32 %s29, 1
        %s451 = sand.u32 %s42, 1
        %s452 = scalar_lea.sflag [#allocation3], %s451
        %s453 = sand.u32 %s42, 1
        %s454 = smul.addr %s453, 16
        %s455 = scalar_lea.vmem [#allocation2], %s454
        // Predicated region
        $region65: #{tpu_custom_call.1} parent=63 // pred_check
          %p456 = pneg %p55
        $region66: #{tpu_custom_call.1} parent=63 // pred_check_branch
          %458 = sbr.rel (%p456) target = $region68
        $region67: #{tpu_custom_call.1} parent=63 // pred_region
          %459 = dma.done %s452, 256
        $region68: #{tpu_custom_call.1} parent=63 // pred_fallthru
          _
        %s460 = sand.u32 %s34, 1
        %s461 = scalar_lea.sflag [#allocation6], %s460
        %s462 = sand.u32 %s68, 1
        %s463 = smul.addr %s462, 16
        %s464 = scalar_lea.vmem [#allocation5], %s463
        // Predicated region
        $region69: #{tpu_custom_call.1} parent=63 // pred_check
          %p465 = pneg %p81
        $region70: #{tpu_custom_call.1} parent=63 // pred_check_branch
          %467 = sbr.rel (%p465) target = $region72
        $region71: #{tpu_custom_call.1} parent=63 // pred_region
          %468 = dma.done %s461, 256
        $region72: #{tpu_custom_call.1} parent=63 // pred_fallthru
          _
        // Predicated region
        $region73: #{tpu_custom_call.1} parent=63 // pred_check
          %p469 = pneg %p102
        $region74: #{tpu_custom_call.1} parent=63 // pred_check_branch
          %471 = sbr.rel (%p469) target = $region76
        $region75: #{tpu_custom_call.1} parent=63 // pred_region
          %472 = dma.done [#allocation6], 1024
        $region76: #{tpu_custom_call.1} parent=63 // pred_fallthru
          _
        // Predicated region
        $region77: #{tpu_custom_call.1} parent=63 // pred_check
          %p473 = pneg %p123
        $region78: #{tpu_custom_call.1} parent=63 // pred_check_branch
          %475 = sbr.rel (%p473) target = $region80
        $region79: #{tpu_custom_call.1} parent=63 // pred_region
          %476 = dma.done [#allocation9], 1024
        $region80: #{tpu_custom_call.1} parent=63 // pred_fallthru
          _
        // Predicated region
        $region81: #{tpu_custom_call.1} parent=63 // pred_check
          %p477 = pneg %p165
        $region82: #{tpu_custom_call.1} parent=63 // pred_check_branch
          %479 = sbr.rel (%p477) target = $region84
        $region83: #{tpu_custom_call.1} parent=63 // pred_region
          %480 = dma.done [#allocation9], 1024
        $region84: #{tpu_custom_call.1} parent=63 // pred_fallthru
          _
        // Predicated region
        $region85: #{tpu_custom_call.1} parent=63 // pred_check
          %p481 = pneg %p186
        $region86: #{tpu_custom_call.1} parent=63 // pred_check_branch
          %483 = sbr.rel (%p481) target = $region88
        $region87: #{tpu_custom_call.1} parent=63 // pred_region
          %484 = dma.done [#allocation12], 1024
        $region88: #{tpu_custom_call.1} parent=63 // pred_fallthru
          _
        // Predicated region
        $region89: #{tpu_custom_call.1} parent=63 // pred_check
          %p485 = pneg %p207
        $region90: #{tpu_custom_call.1} parent=63 // pred_check_branch
          %487 = sbr.rel (%p485) target = $region92
        $region91: #{tpu_custom_call.1} parent=63 // pred_region
          %488 = dma.done [#allocation12], 1024
        $region92: #{tpu_custom_call.1} parent=63 // pred_fallthru
          _
        // Predicated region
        $region93: #{tpu_custom_call.1} parent=63 // pred_check
          %p489 = pneg %p249
        $region94: #{tpu_custom_call.1} parent=63 // pred_check_branch
          %491 = sbr.rel (%p489) target = $region96
        $region95: #{tpu_custom_call.1} parent=63 // pred_region
          %492 = dma.done [#allocation15], 1024
        $region96: #{tpu_custom_call.1} parent=63 // pred_fallthru
          _
        %s493 = sand.u32 %s42, 1
        %s494 = scalar_lea.sflag [#allocation3], %s493
        %s495 = sand.u32 %s42, 1
        %s496 = smul.addr %s495, 16
        %s497 = scalar_lea.vmem [#allocation2], %s496
        %p498 = pneg %p55
        %p499 = pneg %p52
        %s500 = sand.u32 %s34, 1
        %s501 = scalar_lea.sflag [#allocation6], %s500
        %s502 = sand.u32 %s68, 1
        %s503 = smul.addr %s502, 16
        %s504 = scalar_lea.vmem [#allocation5], %s503
        %p505 = pneg %p81
        %p506 = pneg %p78
        %p507 = pneg %p102
        %p508 = pneg %p99
        %p509 = pneg %p123
        %p510 = pneg %p120
        %p511 = pneg %p144
        %p512 = pneg %p141
        %p513 = pneg %p165
        %p514 = pneg %p162
        %p515 = pneg %p186
        %p516 = pneg %p183
        %p517 = pneg %p207
        %p518 = pneg %p204
        %p519 = pneg %p228
        %p520 = pneg %p225
        %p521 = pneg %p249
        %p522 = pneg %p246
        %p523 = pneg %p270
        %p524 = pneg %p267
        %p525 = pneg %p296
        %p526 = pneg %p293
        %s527 = sand.u32 %s283, 1
        %s528 = scalar_lea.sflag [#allocation4], %s527
        %s529 = sand.u32 %s283, 1
        %s530 = smul.addr %s529, 8
        %s531 = scalar_lea.vmem [#allocation16], %s530
        %s532 = smul.u32 2, %s34
        %s533 = smul.u32 2, %s34
        %s534 = smul.u32 2, %s34
        %v536 = vld [vmem:[%s455] sm:$0xff]
        %v537 = vld [vmem:[%s455 + $0x8] sm:$0xff]
        %v538 = vpack.c.bf16 %v537, %v536
        %v539 = vld [vmem:[%s464] sm:$0xff]
        %v540 = vld [vmem:[%s464 + $0x8] sm:$0xff]
        %v541 = vpack.c.bf16 %v540, %v539
        %v542 = vld [vmem:[#allocation7] sm:$0xf]
        %v543 = vld [vmem:[#allocation7 + $0x4] sm:$0xf]
        %v544 = vld [vmem:[#allocation7 + $0x8] sm:$0xf]
        %v545 = vld [vmem:[#allocation7 + $0xc] sm:$0xf]
        %v546 = vld [vmem:[#allocation7 + $0x10] sm:$0xf]
        %v547 = vld [vmem:[#allocation7 + $0x14] sm:$0xf]
        %v548 = vld [vmem:[#allocation7 + $0x18] sm:$0xf]
        %v549 = vld [vmem:[#allocation7 + $0x1c] sm:$0xf]
        %v550 = vld [vmem:[#allocation7 + $0x20] sm:$0xf]
        %v551 = vld [vmem:[#allocation7 + $0x24] sm:$0xf]
        %v552 = vld [vmem:[#allocation7 + $0x28] sm:$0xf]
        %v553 = vld [vmem:[#allocation7 + $0x2c] sm:$0xf]
        %v554 = vld [vmem:[#allocation7 + $0x30] sm:$0xf]
        %v555 = vld [vmem:[#allocation7 + $0x34] sm:$0xf]
        %v556 = vld [vmem:[#allocation7 + $0x38] sm:$0xf]
        %v557 = vld [vmem:[#allocation7 + $0x3c] sm:$0xf]
        %v558 = vld [vmem:[#allocation8] sm:$0xf]
        %v559 = vld [vmem:[#allocation8 + $0x4] sm:$0xf]
        %v560 = vld [vmem:[#allocation8 + $0x8] sm:$0xf]
        %v561 = vld [vmem:[#allocation8 + $0xc] sm:$0xf]
        %v562 = vld [vmem:[#allocation8 + $0x10] sm:$0xf]
        %v563 = vld [vmem:[#allocation8 + $0x14] sm:$0xf]
        %v564 = vld [vmem:[#allocation8 + $0x18] sm:$0xf]
        %v565 = vld [vmem:[#allocation8 + $0x1c] sm:$0xf]
        %v566 = vld [vmem:[#allocation8 + $0x20] sm:$0xf]
        %v567 = vld [vmem:[#allocation8 + $0x24] sm:$0xf]
        %v568 = vld [vmem:[#allocation8 + $0x28] sm:$0xf]
        %v569 = vld [vmem:[#allocation8 + $0x2c] sm:$0xf]
        %v570 = vld [vmem:[#allocation8 + $0x30] sm:$0xf]
        %v571 = vld [vmem:[#allocation8 + $0x34] sm:$0xf]
        %v572 = vld [vmem:[#allocation8 + $0x38] sm:$0xf]
        %v573 = vld [vmem:[#allocation8 + $0x3c] sm:$0xf]
        %v590 = vunpack.c.l.b16 %v558
        %v591 = vunpack.c.l.b16 %v559
        %v592 = vunpack.c.l.b16 %v560
        %v593 = vunpack.c.l.b16 %v561
        %v594 = vunpack.c.l.b16 %v562
        %v595 = vunpack.c.l.b16 %v563
        %v596 = vunpack.c.l.b16 %v564
        %v597 = vunpack.c.l.b16 %v565
        %v598 = vunpack.c.l.b16 %v566
        %v599 = vunpack.c.l.b16 %v567
        %v600 = vunpack.c.l.b16 %v568
        %v601 = vunpack.c.l.b16 %v569
        %v602 = vunpack.c.l.b16 %v570
        %v603 = vunpack.c.l.b16 %v571
        %v604 = vunpack.c.l.b16 %v572
        %v605 = vunpack.c.l.b16 %v573
        %v606 = vpack.c.b16 %v591, %v590
        %v607 = vpack.c.b16 %v593, %v592
        %v608 = vpack.c.b16 %v595, %v594
        %v609 = vpack.c.b16 %v597, %v596
        %v610 = vpack.c.b16 %v599, %v598
        %v611 = vpack.c.b16 %v601, %v600
        %v612 = vpack.c.b16 %v603, %v602
        %v613 = vpack.c.b16 %v605, %v604
        %622 = vmatprep.subr.bf16.mxu0 0
        %623 = vmatpush1.bf16.msra.mxu0 %v606
        %624 = vmatprep.subr.bf16.mxu0 0
        %625 = vmatpush1.bf16.msra.mxu0 %v607
        %626 = vmatprep.subr.bf16.mxu0 0
        %627 = vmatpush1.bf16.msra.mxu0 %v608
        %628 = vmatprep.subr.bf16.mxu0 0
        %629 = vmatpush1.bf16.msra.mxu0 %v609
        %630 = vmatprep.subr.bf16.mxu0 0
        %631 = vmatpush1.bf16.msra.mxu0 %v610
        %632 = vmatprep.subr.bf16.mxu0 0
        %633 = vmatpush1.bf16.msra.mxu0 %v611
        %634 = vmatprep.subr.bf16.mxu0 0
        %635 = vmatpush1.bf16.msra.mxu0 %v612
        %636 = vmatprep.subr.bf16.mxu0 0
        %637 = vmatpush1.bf16.msra.mxu0 %v613
        %638 = vmatprep.subr.bf16.mxu0 0
        %639 = vmatpush1.bf16.msra.mxu0 0
        %640 = vmatprep.subr.bf16.mxu0 0
        %641 = vmatpush1.bf16.msra.mxu0 0
        %642 = vmatprep.subr.bf16.mxu0 0
        %643 = vmatpush1.bf16.msra.mxu0 0
        %644 = vmatprep.subr.bf16.mxu0 0
        %645 = vmatpush1.bf16.msra.mxu0 0
        %646 = vmatprep.subr.bf16.mxu0 0
        %647 = vmatpush1.bf16.msra.mxu0 0
        %648 = vmatprep.subr.bf16.mxu0 0
        %649 = vmatpush1.bf16.msra.mxu0 0
        %650 = vmatprep.subr.bf16.mxu0 0
        %651 = vmatpush1.bf16.msra.mxu0 0
        %652 = vmatprep.subr.bf16.mxu0 0
        %653 = vmatpush1.bf16.msra.mxu0 0
        %654 = vmatprep.mubr.bf16.mxu0 0
        %655 = vmatmul.mubr.bf16.gmra.mrb[0].mxu0 %v541
        %v656 = vpop.f32.mrb[0].mxu0
        %v657 = vadd.f32 0.0, %v656
        %v658 = vpop.f32.mrb[0].mxu0
        %v659 = vpop.f32.mrb[0].mxu0
        %v660 = vadd.f32 0.0, %v659
        %v661 = vpop.f32.mrb[0].mxu0
        %662 = vdwg.mxu0
        %v679 = vunpack.c.l.b16 %v542
        %v680 = vunpack.c.l.b16 %v543
        %v681 = vunpack.c.l.b16 %v544
        %v682 = vunpack.c.l.b16 %v545
        %v683 = vunpack.c.l.b16 %v546
        %v684 = vunpack.c.l.b16 %v547
        %v685 = vunpack.c.l.b16 %v548
        %v686 = vunpack.c.l.b16 %v549
        %v687 = vunpack.c.l.b16 %v550
        %v688 = vunpack.c.l.b16 %v551
        %v689 = vunpack.c.l.b16 %v552
        %v690 = vunpack.c.l.b16 %v553
        %v691 = vunpack.c.l.b16 %v554
        %v692 = vunpack.c.l.b16 %v555
        %v693 = vunpack.c.l.b16 %v556
        %v694 = vunpack.c.l.b16 %v557
        %v695 = vpack.c.b16 %v680, %v679
        %v696 = vpack.c.b16 %v682, %v681
        %v697 = vpack.c.b16 %v684, %v683
        %v698 = vpack.c.b16 %v686, %v685
        %v699 = vpack.c.b16 %v688, %v687
        %v700 = vpack.c.b16 %v690, %v689
        %v701 = vpack.c.b16 %v692, %v691
        %v702 = vpack.c.b16 %v694, %v693
        %711 = vmatprep.subr.bf16.mxu0 0
        %712 = vmatpush1.bf16.msra.mxu0 %v695
        %713 = vmatprep.subr.bf16.mxu0 0
        %714 = vmatpush1.bf16.msra.mxu0 %v696
        %715 = vmatprep.subr.bf16.mxu0 0
        %716 = vmatpush1.bf16.msra.mxu0 %v697
        %717 = vmatprep.subr.bf16.mxu0 0
        %718 = vmatpush1.bf16.msra.mxu0 %v698
        %719 = vmatprep.subr.bf16.mxu0 0
        %720 = vmatpush1.bf16.msra.mxu0 %v699
        %721 = vmatprep.subr.bf16.mxu0 0
        %722 = vmatpush1.bf16.msra.mxu0 %v700
        %723 = vmatprep.subr.bf16.mxu0 0
        %724 = vmatpush1.bf16.msra.mxu0 %v701
        %725 = vmatprep.subr.bf16.mxu0 0
        %726 = vmatpush1.bf16.msra.mxu0 %v702
        %727 = vmatprep.subr.bf16.mxu0 0
        %728 = vmatpush1.bf16.msra.mxu0 0
        %729 = vmatprep.subr.bf16.mxu0 0
        %730 = vmatpush1.bf16.msra.mxu0 0
        %731 = vmatprep.subr.bf16.mxu0 0
        %732 = vmatpush1.bf16.msra.mxu0 0
        %733 = vmatprep.subr.bf16.mxu0 0
        %734 = vmatpush1.bf16.msra.mxu0 0
        %735 = vmatprep.subr.bf16.mxu0 0
        %736 = vmatpush1.bf16.msra.mxu0 0
        %737 = vmatprep.subr.bf16.mxu0 0
        %738 = vmatpush1.bf16.msra.mxu0 0
        %739 = vmatprep.subr.bf16.mxu0 0
        %740 = vmatpush1.bf16.msra.mxu0 0
        %741 = vmatprep.subr.bf16.mxu0 0
        %742 = vmatpush1.bf16.msra.mxu0 0
        %743 = vmatprep.mubr.bf16.mxu0 0
        %744 = vmatmul.mubr.bf16.gmra.mrb[0].mxu0 %v538
        %v745 = vpop.f32.mrb[0].mxu0
        %v746 = vadd.f32 %v657, %v745
        %v747 = vpop.f32.mrb[0].mxu0
        %v748 = vpop.f32.mrb[0].mxu0
        %v749 = vadd.f32 %v660, %v748
        %v750 = vpop.f32.mrb[0].mxu0
        %751 = vdwg.mxu0
        %v752 = vld [vmem:[%s4] sm:$0x1]
        %v754 = vlaneseq
        %v755 = vshrl.u32 %v754, 7
        %v756 = vsub.s32 0, %v755
        %v757 = vrot.slane %v752, %v756
        %v759 = vadd.f32 %v746, %v757
        %v760 = vadd.f32 %v749, %v757
        %v761 = vld [vmem:[#allocation10] sm:$0xf]
        %v762 = vld [vmem:[#allocation10 + $0x4] sm:$0xf]
        %v763 = vld [vmem:[#allocation10 + $0x8] sm:$0xf]
        %v764 = vld [vmem:[#allocation10 + $0xc] sm:$0xf]
        %v765 = vld [vmem:[#allocation10 + $0x10] sm:$0xf]
        %v766 = vld [vmem:[#allocation10 + $0x14] sm:$0xf]
        %v767 = vld [vmem:[#allocation10 + $0x18] sm:$0xf]
        %v768 = vld [vmem:[#allocation10 + $0x1c] sm:$0xf]
        %v769 = vld [vmem:[#allocation10 + $0x20] sm:$0xf]
        %v770 = vld [vmem:[#allocation10 + $0x24] sm:$0xf]
        %v771 = vld [vmem:[#allocation10 + $0x28] sm:$0xf]
        %v772 = vld [vmem:[#allocation10 + $0x2c] sm:$0xf]
        %v773 = vld [vmem:[#allocation10 + $0x30] sm:$0xf]
        %v774 = vld [vmem:[#allocation10 + $0x34] sm:$0xf]
        %v775 = vld [vmem:[#allocation10 + $0x38] sm:$0xf]
        %v776 = vld [vmem:[#allocation10 + $0x3c] sm:$0xf]
        %v777 = vld [vmem:[#allocation11] sm:$0xf]
        %v778 = vld [vmem:[#allocation11 + $0x4] sm:$0xf]
        %v779 = vld [vmem:[#allocation11 + $0x8] sm:$0xf]
        %v780 = vld [vmem:[#allocation11 + $0xc] sm:$0xf]
        %v781 = vld [vmem:[#allocation11 + $0x10] sm:$0xf]
        %v782 = vld [vmem:[#allocation11 + $0x14] sm:$0xf]
        %v783 = vld [vmem:[#allocation11 + $0x18] sm:$0xf]
        %v784 = vld [vmem:[#allocation11 + $0x1c] sm:$0xf]
        %v785 = vld [vmem:[#allocation11 + $0x20] sm:$0xf]
        %v786 = vld [vmem:[#allocation11 + $0x24] sm:$0xf]
        %v787 = vld [vmem:[#allocation11 + $0x28] sm:$0xf]
        %v788 = vld [vmem:[#allocation11 + $0x2c] sm:$0xf]
        %v789 = vld [vmem:[#allocation11 + $0x30] sm:$0xf]
        %v790 = vld [vmem:[#allocation11 + $0x34] sm:$0xf]
        %v791 = vld [vmem:[#allocation11 + $0x38] sm:$0xf]
        %v792 = vld [vmem:[#allocation11 + $0x3c] sm:$0xf]
        %v809 = vunpack.c.l.b16 %v777
        %v810 = vunpack.c.l.b16 %v778
        %v811 = vunpack.c.l.b16 %v779
        %v812 = vunpack.c.l.b16 %v780
        %v813 = vunpack.c.l.b16 %v781
        %v814 = vunpack.c.l.b16 %v782
        %v815 = vunpack.c.l.b16 %v783
        %v816 = vunpack.c.l.b16 %v784
        %v817 = vunpack.c.l.b16 %v785
        %v818 = vunpack.c.l.b16 %v786
        %v819 = vunpack.c.l.b16 %v787
        %v820 = vunpack.c.l.b16 %v788
        %v821 = vunpack.c.l.b16 %v789
        %v822 = vunpack.c.l.b16 %v790
        %v823 = vunpack.c.l.b16 %v791
        %v824 = vunpack.c.l.b16 %v792
        %v825 = vpack.c.b16 %v810, %v809
        %v826 = vpack.c.b16 %v812, %v811
        %v827 = vpack.c.b16 %v814, %v813
        %v828 = vpack.c.b16 %v816, %v815
        %v829 = vpack.c.b16 %v818, %v817
        %v830 = vpack.c.b16 %v820, %v819
        %v831 = vpack.c.b16 %v822, %v821
        %v832 = vpack.c.b16 %v824, %v823
        %841 = vmatprep.subr.bf16.mxu0 0
        %842 = vmatpush1.bf16.msra.mxu0 %v825
        %843 = vmatprep.subr.bf16.mxu0 0
        %844 = vmatpush1.bf16.msra.mxu0 %v826
        %845 = vmatprep.subr.bf16.mxu0 0
        %846 = vmatpush1.bf16.msra.mxu0 %v827
        %847 = vmatprep.subr.bf16.mxu0 0
        %848 = vmatpush1.bf16.msra.mxu0 %v828
        %849 = vmatprep.subr.bf16.mxu0 0
        %850 = vmatpush1.bf16.msra.mxu0 %v829
        %851 = vmatprep.subr.bf16.mxu0 0
        %852 = vmatpush1.bf16.msra.mxu0 %v830
        %853 = vmatprep.subr.bf16.mxu0 0
        %854 = vmatpush1.bf16.msra.mxu0 %v831
        %855 = vmatprep.subr.bf16.mxu0 0
        %856 = vmatpush1.bf16.msra.mxu0 %v832
        %857 = vmatprep.subr.bf16.mxu0 0
        %858 = vmatpush1.bf16.msra.mxu0 0
        %859 = vmatprep.subr.bf16.mxu0 0
        %860 = vmatpush1.bf16.msra.mxu0 0
        %861 = vmatprep.subr.bf16.mxu0 0
        %862 = vmatpush1.bf16.msra.mxu0 0
        %863 = vmatprep.subr.bf16.mxu0 0
        %864 = vmatpush1.bf16.msra.mxu0 0
        %865 = vmatprep.subr.bf16.mxu0 0
        %866 = vmatpush1.bf16.msra.mxu0 0
        %867 = vmatprep.subr.bf16.mxu0 0
        %868 = vmatpush1.bf16.msra.mxu0 0
        %869 = vmatprep.subr.bf16.mxu0 0
        %870 = vmatpush1.bf16.msra.mxu0 0
        %871 = vmatprep.subr.bf16.mxu0 0
        %872 = vmatpush1.bf16.msra.mxu0 0
        %873 = vmatprep.mubr.bf16.mxu0 0
        %874 = vmatmul.mubr.bf16.gmra.mrb[0].mxu0 %v541
        %v875 = vpop.f32.mrb[0].mxu0
        %v876 = vadd.f32 0.0, %v875
        %v877 = vpop.f32.mrb[0].mxu0
        %v878 = vpop.f32.mrb[0].mxu0
        %v879 = vadd.f32 0.0, %v878
        %v880 = vpop.f32.mrb[0].mxu0
        %881 = vdwg.mxu0
        %v898 = vunpack.c.l.b16 %v761
        %v899 = vunpack.c.l.b16 %v762
        %v900 = vunpack.c.l.b16 %v763
        %v901 = vunpack.c.l.b16 %v764
        %v902 = vunpack.c.l.b16 %v765
        %v903 = vunpack.c.l.b16 %v766
        %v904 = vunpack.c.l.b16 %v767
        %v905 = vunpack.c.l.b16 %v768
        %v906 = vunpack.c.l.b16 %v769
        %v907 = vunpack.c.l.b16 %v770
        %v908 = vunpack.c.l.b16 %v771
        %v909 = vunpack.c.l.b16 %v772
        %v910 = vunpack.c.l.b16 %v773
        %v911 = vunpack.c.l.b16 %v774
        %v912 = vunpack.c.l.b16 %v775
        %v913 = vunpack.c.l.b16 %v776
        %v914 = vpack.c.b16 %v899, %v898
        %v915 = vpack.c.b16 %v901, %v900
        %v916 = vpack.c.b16 %v903, %v902
        %v917 = vpack.c.b16 %v905, %v904
        %v918 = vpack.c.b16 %v907, %v906
        %v919 = vpack.c.b16 %v909, %v908
        %v920 = vpack.c.b16 %v911, %v910
        %v921 = vpack.c.b16 %v913, %v912
        %930 = vmatprep.subr.bf16.mxu0 0
        %931 = vmatpush1.bf16.msra.mxu0 %v914
        %932 = vmatprep.subr.bf16.mxu0 0
        %933 = vmatpush1.bf16.msra.mxu0 %v915
        %934 = vmatprep.subr.bf16.mxu0 0
        %935 = vmatpush1.bf16.msra.mxu0 %v916
        %936 = vmatprep.subr.bf16.mxu0 0
        %937 = vmatpush1.bf16.msra.mxu0 %v917
        %938 = vmatprep.subr.bf16.mxu0 0
        %939 = vmatpush1.bf16.msra.mxu0 %v918
        %940 = vmatprep.subr.bf16.mxu0 0
        %941 = vmatpush1.bf16.msra.mxu0 %v919
        %942 = vmatprep.subr.bf16.mxu0 0
        %943 = vmatpush1.bf16.msra.mxu0 %v920
        %944 = vmatprep.subr.bf16.mxu0 0
        %945 = vmatpush1.bf16.msra.mxu0 %v921
        %946 = vmatprep.subr.bf16.mxu0 0
        %947 = vmatpush1.bf16.msra.mxu0 0
        %948 = vmatprep.subr.bf16.mxu0 0
        %949 = vmatpush1.bf16.msra.mxu0 0
        %950 = vmatprep.subr.bf16.mxu0 0
        %951 = vmatpush1.bf16.msra.mxu0 0
        %952 = vmatprep.subr.bf16.mxu0 0
        %953 = vmatpush1.bf16.msra.mxu0 0
        %954 = vmatprep.subr.bf16.mxu0 0
        %955 = vmatpush1.bf16.msra.mxu0 0
        %956 = vmatprep.subr.bf16.mxu0 0
        %957 = vmatpush1.bf16.msra.mxu0 0
        %958 = vmatprep.subr.bf16.mxu0 0
        %959 = vmatpush1.bf16.msra.mxu0 0
        %960 = vmatprep.subr.bf16.mxu0 0
        %961 = vmatpush1.bf16.msra.mxu0 0
        %962 = vmatprep.mubr.bf16.mxu0 0
        %963 = vmatmul.mubr.bf16.gmra.mrb[0].mxu0 %v538
        %v964 = vpop.f32.mrb[0].mxu0
        %v965 = vadd.f32 %v876, %v964
        %v966 = vpop.f32.mrb[0].mxu0
        %v967 = vpop.f32.mrb[0].mxu0
        %v968 = vadd.f32 %v879, %v967
        %v969 = vpop.f32.mrb[0].mxu0
        %970 = vdwg.mxu0
        %v971 = vpack.c.bf16 %v760, %v759
        %v972 = vld [vmem:[#allocation13] sm:$0xf]
        %v973 = vld [vmem:[#allocation13 + $0x4] sm:$0xf]
        %v974 = vld [vmem:[#allocation13 + $0x8] sm:$0xf]
        %v975 = vld [vmem:[#allocation13 + $0xc] sm:$0xf]
        %v976 = vld [vmem:[#allocation13 + $0x10] sm:$0xf]
        %v977 = vld [vmem:[#allocation13 + $0x14] sm:$0xf]
        %v978 = vld [vmem:[#allocation13 + $0x18] sm:$0xf]
        %v979 = vld [vmem:[#allocation13 + $0x1c] sm:$0xf]
        %v980 = vld [vmem:[#allocation13 + $0x20] sm:$0xf]
        %v981 = vld [vmem:[#allocation13 + $0x24] sm:$0xf]
        %v982 = vld [vmem:[#allocation13 + $0x28] sm:$0xf]
        %v983 = vld [vmem:[#allocation13 + $0x2c] sm:$0xf]
        %v984 = vld [vmem:[#allocation13 + $0x30] sm:$0xf]
        %v985 = vld [vmem:[#allocation13 + $0x34] sm:$0xf]
        %v986 = vld [vmem:[#allocation13 + $0x38] sm:$0xf]
        %v987 = vld [vmem:[#allocation13 + $0x3c] sm:$0xf]
        %v1004 = vunpack.c.l.b16 %v972
        %v1005 = vunpack.c.l.b16 %v973
        %v1006 = vunpack.c.l.b16 %v974
        %v1007 = vunpack.c.l.b16 %v975
        %v1008 = vunpack.c.l.b16 %v976
        %v1009 = vunpack.c.l.b16 %v977
        %v1010 = vunpack.c.l.b16 %v978
        %v1011 = vunpack.c.l.b16 %v979
        %v1012 = vunpack.c.l.b16 %v980
        %v1013 = vunpack.c.l.b16 %v981
        %v1014 = vunpack.c.l.b16 %v982
        %v1015 = vunpack.c.l.b16 %v983
        %v1016 = vunpack.c.l.b16 %v984
        %v1017 = vunpack.c.l.b16 %v985
        %v1018 = vunpack.c.l.b16 %v986
        %v1019 = vunpack.c.l.b16 %v987
        %v1020 = vpack.c.b16 %v1005, %v1004
        %v1021 = vpack.c.b16 %v1007, %v1006
        %v1022 = vpack.c.b16 %v1009, %v1008
        %v1023 = vpack.c.b16 %v1011, %v1010
        %v1024 = vpack.c.b16 %v1013, %v1012
        %v1025 = vpack.c.b16 %v1015, %v1014
        %v1026 = vpack.c.b16 %v1017, %v1016
        %v1027 = vpack.c.b16 %v1019, %v1018
        %1036 = vmatprep.subr.bf16.mxu0 0
        %1037 = vmatpush1.bf16.msra.mxu0 %v1020
        %1038 = vmatprep.subr.bf16.mxu0 0
        %1039 = vmatpush1.bf16.msra.mxu0 %v1021
        %1040 = vmatprep.subr.bf16.mxu0 0
        %1041 = vmatpush1.bf16.msra.mxu0 %v1022
        %1042 = vmatprep.subr.bf16.mxu0 0
        %1043 = vmatpush1.bf16.msra.mxu0 %v1023
        %1044 = vmatprep.subr.bf16.mxu0 0
        %1045 = vmatpush1.bf16.msra.mxu0 %v1024
        %1046 = vmatprep.subr.bf16.mxu0 0
        %1047 = vmatpush1.bf16.msra.mxu0 %v1025
        %1048 = vmatprep.subr.bf16.mxu0 0
        %1049 = vmatpush1.bf16.msra.mxu0 %v1026
        %1050 = vmatprep.subr.bf16.mxu0 0
        %1051 = vmatpush1.bf16.msra.mxu0 %v1027
        %1052 = vmatprep.subr.bf16.mxu0 0
        %1053 = vmatpush1.bf16.msra.mxu0 0
        %1054 = vmatprep.subr.bf16.mxu0 0
        %1055 = vmatpush1.bf16.msra.mxu0 0
        %1056 = vmatprep.subr.bf16.mxu0 0
        %1057 = vmatpush1.bf16.msra.mxu0 0
        %1058 = vmatprep.subr.bf16.mxu0 0
        %1059 = vmatpush1.bf16.msra.mxu0 0
        %1060 = vmatprep.subr.bf16.mxu0 0
        %1061 = vmatpush1.bf16.msra.mxu0 0
        %1062 = vmatprep.subr.bf16.mxu0 0
        %1063 = vmatpush1.bf16.msra.mxu0 0
        %1064 = vmatprep.subr.bf16.mxu0 0
        %1065 = vmatpush1.bf16.msra.mxu0 0
        %1066 = vmatprep.subr.bf16.mxu0 0
        %1067 = vmatpush1.bf16.msra.mxu0 0
        %1068 = vmatprep.mubr.bf16.mxu0 0
        %1069 = vmatmul.mubr.bf16.gmra.mrb[0].mxu0 %v971
        %v1070 = vpop.f32.mrb[0].mxu0
        %v1071 = vadd.f32 0.0, %v1070
        %v1072 = vpop.f32.mrb[0].mxu0
        %v1073 = vpop.f32.mrb[0].mxu0
        %v1074 = vadd.f32 0.0, %v1073
        %v1075 = vpop.f32.mrb[0].mxu0
        %1076 = vdwg.mxu0
        %v1077 = vadd.f32 %v965, %v1071
        %v1078 = vadd.f32 %v968, %v1074
        %v1079 = vld [vmem:[%s8] sm:$0x1]
        %v1081 = vlaneseq
        %v1082 = vshrl.u32 %v1081, 7
        %v1083 = vsub.s32 0, %v1082
        %v1084 = vrot.slane %v1079, %v1083
        %v1086 = vadd.f32 %v1077, %v1084
        %v1087 = vadd.f32 %v1078, %v1084
        %v1088 = vpack.c.bf16 %v1087, %v1086
        %v1089 = vld [vmem:[#allocation14] sm:$0xf]
        %v1090 = vld [vmem:[#allocation14 + $0x4] sm:$0xf]
        %v1091 = vld [vmem:[#allocation14 + $0x8] sm:$0xf]
        %v1092 = vld [vmem:[#allocation14 + $0xc] sm:$0xf]
        %v1093 = vld [vmem:[#allocation14 + $0x10] sm:$0xf]
        %v1094 = vld [vmem:[#allocation14 + $0x14] sm:$0xf]
        %v1095 = vld [vmem:[#allocation14 + $0x18] sm:$0xf]
        %v1096 = vld [vmem:[#allocation14 + $0x1c] sm:$0xf]
        %v1097 = vld [vmem:[#allocation14 + $0x20] sm:$0xf]
        %v1098 = vld [vmem:[#allocation14 + $0x24] sm:$0xf]
        %v1099 = vld [vmem:[#allocation14 + $0x28] sm:$0xf]
        %v1100 = vld [vmem:[#allocation14 + $0x2c] sm:$0xf]
        %v1101 = vld [vmem:[#allocation14 + $0x30] sm:$0xf]
        %v1102 = vld [vmem:[#allocation14 + $0x34] sm:$0xf]
        %v1103 = vld [vmem:[#allocation14 + $0x38] sm:$0xf]
        %v1104 = vld [vmem:[#allocation14 + $0x3c] sm:$0xf]
        %v1105 = vld [vmem:[%s10] sm:$0x1]
        %v1107 = vlaneseq
        %v1108 = vshrl.u32 %v1107, 7
        %v1109 = vsub.s32 0, %v1108
        %v1110 = vrot.slane %v1105, %v1109
        %v1128 = vunpack.c.l.b16 %v1089
        %v1129 = vunpack.c.l.b16 %v1090
        %v1130 = vunpack.c.l.b16 %v1091
        %v1131 = vunpack.c.l.b16 %v1092
        %v1132 = vunpack.c.l.b16 %v1093
        %v1133 = vunpack.c.l.b16 %v1094
        %v1134 = vunpack.c.l.b16 %v1095
        %v1135 = vunpack.c.l.b16 %v1096
        %v1136 = vunpack.c.l.b16 %v1097
        %v1137 = vunpack.c.l.b16 %v1098
        %v1138 = vunpack.c.l.b16 %v1099
        %v1139 = vunpack.c.l.b16 %v1100
        %v1140 = vunpack.c.l.b16 %v1101
        %v1141 = vunpack.c.l.b16 %v1102
        %v1142 = vunpack.c.l.b16 %v1103
        %v1143 = vunpack.c.l.b16 %v1104
        %v1144 = vpack.c.b16 %v1129, %v1128
        %v1145 = vpack.c.b16 %v1131, %v1130
        %v1146 = vpack.c.b16 %v1133, %v1132
        %v1147 = vpack.c.b16 %v1135, %v1134
        %v1148 = vpack.c.b16 %v1137, %v1136
        %v1149 = vpack.c.b16 %v1139, %v1138
        %v1150 = vpack.c.b16 %v1141, %v1140
        %v1151 = vpack.c.b16 %v1143, %v1142
        %1160 = vmatprep.subr.bf16.mxu0 0
        %1161 = vmatpush1.bf16.msra.mxu0 %v1144
        %1162 = vmatprep.subr.bf16.mxu0 0
        %1163 = vmatpush1.bf16.msra.mxu0 %v1145
        %1164 = vmatprep.subr.bf16.mxu0 0
        %1165 = vmatpush1.bf16.msra.mxu0 %v1146
        %1166 = vmatprep.subr.bf16.mxu0 0
        %1167 = vmatpush1.bf16.msra.mxu0 %v1147
        %1168 = vmatprep.subr.bf16.mxu0 0
        %1169 = vmatpush1.bf16.msra.mxu0 %v1148
        %1170 = vmatprep.subr.bf16.mxu0 0
        %1171 = vmatpush1.bf16.msra.mxu0 %v1149
        %1172 = vmatprep.subr.bf16.mxu0 0
        %1173 = vmatpush1.bf16.msra.mxu0 %v1150
        %1174 = vmatprep.subr.bf16.mxu0 0
        %1175 = vmatpush1.bf16.msra.mxu0 %v1151
        %1176 = vmatprep.subr.bf16.mxu0 0
        %1177 = vmatpush1.bf16.msra.mxu0 0
        %1178 = vmatprep.subr.bf16.mxu0 0
        %1179 = vmatpush1.bf16.msra.mxu0 0
        %1180 = vmatprep.subr.bf16.mxu0 0
        %1181 = vmatpush1.bf16.msra.mxu0 0
        %1182 = vmatprep.subr.bf16.mxu0 0
        %1183 = vmatpush1.bf16.msra.mxu0 0
        %1184 = vmatprep.subr.bf16.mxu0 0
        %1185 = vmatpush1.bf16.msra.mxu0 0
        %1186 = vmatprep.subr.bf16.mxu0 0
        %1187 = vmatpush1.bf16.msra.mxu0 0
        %1188 = vmatprep.subr.bf16.mxu0 0
        %1189 = vmatpush1.bf16.msra.mxu0 0
        %1190 = vmatprep.subr.bf16.mxu0 0
        %1191 = vmatpush1.bf16.msra.mxu0 0
        %1192 = vmatprep.mubr.bf16.mxu0 0
        %1193 = vmatmul.mubr.bf16.gmra.mrb[0].mxu0 %v1088
        %v1194 = vpop.f32.mrb[0].mxu0
        %v1195 = vadd.f32 %v1110, %v1194
        %v1196 = vpop.f32.mrb[0].mxu0
        %v1197 = vpop.f32.mrb[0].mxu0
        %v1198 = vadd.f32 %v1110, %v1197
        %v1199 = vpop.f32.mrb[0].mxu0
        %1200 = vdwg.mxu0
        %v1201 = vpack.c.bf16 %v1198, %v1195
        %v1203 = vunpack.c.l.b16 %v1201
        %v1204 = vunpack.c.h.b16 %v1201
        %v1205 = vpack.c.b16 %v1203, %v1203
        %v1206 = vpack.c.b16 %v1204, %v1204
        %1209 = vst [vmem:[%s531] sm:$0xf] %v1205
        %1210 = vst [vmem:[%s531 + $0x4] sm:$0xf] %v1206
        %s1211 = sand.u32 %s283, 1
        %s1212 = scalar_lea.sflag [#allocation4], %s1211
        %s1213 = sand.u32 %s283, 1
        %s1214 = smul.addr %s1213, 8
        %s1215 = scalar_lea.vmem [#allocation16], %s1214
        // Predicated region
        $region97: #{tpu_custom_call.1} parent=63 // pred_check
          %p1216 = pneg %p293
        $region98: #{tpu_custom_call.1} parent=63 // pred_check_branch
          %1218 = sbr.rel (%p1216) target = $region100
        $region99: #{tpu_custom_call.1} parent=63 // pred_region
          %s1219 = smul.u32 2, %s34
          %s1221 = ssub.s32 128, 128
          %1222 = vsyncadd %s1212, %s1221
          %s1223 = smul.addr %s1219, 64
          %s1224 = scalar_lea.hbm %s11, %s1223
          %s1225 = sshll.u32 %s1215, 4
          %s1226 = int_to_ptr.vmem [resolvable:$true] %s1225
          %1231 = dma.vmem_to_hbm [thread:$0]  %s1226, 128, %s1224, %s1212, 64, 64, 4
        $region100: #{tpu_custom_call.1} parent=63 // pred_fallthru
          _
      $region64: #{tpu_custom_call.1} parent=5 // pred_fallthru
        _
      %p1232 = scmp.le.s32.totalorder 2, %s29
      // Predicated region
      $region101: #{tpu_custom_call.1} parent=5 // pred_check
        %p1233 = pneg %p1232
      $region102: #{tpu_custom_call.1} parent=5 // pred_check_branch
        %1235 = sbr.rel (%p1233) target = $region104
      $region103: #{tpu_custom_call.1} parent=5 // pred_region
        %s1236 = ssub.s32 %s29, 2
        // Predicated region
        $region105: #{tpu_custom_call.1} parent=103 // pred_check
          %p1237 = pneg %p299
        $region106: #{tpu_custom_call.1} parent=103 // pred_check_branch
          %1239 = sbr.rel (%p1237) target = $region108
        $region107: #{tpu_custom_call.1} parent=103 // pred_region
          %s1240 = sand.u32 %s284, 1
          %s1241 = scalar_lea.sflag [#allocation4], %s1240
          %s1242 = sand.u32 %s284, 1
          %s1243 = smul.addr %s1242, 8
          %s1244 = scalar_lea.vmem [#allocation16], %s1243
          %1245 = dma.done %s1241, 128
        $region108: #{tpu_custom_call.1} parent=103 // pred_fallthru
          _
      $region104: #{tpu_custom_call.1} parent=5 // pred_fallthru
        _
    $region6: #{tpu_custom_call.1} parent=1 // loop_footer
      %s33 = sadd.s32 1, %s29
    $region7: #{tpu_custom_call.1} parent=1 // loop_footer_branch
      %28 = sbr.rel target = $region3
    $region8: #{tpu_custom_call.1} parent=1 // loop_exit
      _
    %1246 = vsyncpa [#allocation3], 1
    %s1247 = scalar_lea.sflag [#allocation3], 1
    %1248 = vsyncpa %s1247, 1
    %1249 = vsyncpa [#allocation6], 1
    %s1250 = scalar_lea.sflag [#allocation6], 1
    %1251 = vsyncpa %s1250, 1
    %1252 = vsyncpa [#allocation9], 1
    %1253 = vsyncpa [#allocation12], 1
    %1254 = vsyncpa [#allocation15], 1
    %1255 = vsyncpa [#allocation4], 1
    %s1256 = scalar_lea.sflag [#allocation4], 1
    %1257 = vsyncpa %s1256, 1

</llo_original>
